<compile_context>
chip_gen: v6e
topology: v6e:2x2x1
jax: 0.10.0
libtpu: 0.0.40
codegen_flags: <defaults>
</compile_context>

<pallas_src>
import functools

import jax
import jax.numpy as jnp
from jax.experimental import pallas as pl
from jax.experimental.pallas import tpu as pltpu


def _min_filter_kernel(x_ref, o_ref, *, p):
    """x_ref / o_ref: (CB, H, W) blocks.

    Separable clamped-window minimum (identical to reflect-padded window min).
    The accumulator lives directly in the output block; shifted contributions
    are folded in with static-slice partial updates, always sourcing from the
    pass-input snapshot (x for the vertical pass, v for the horizontal pass).
    """
    _, H, W = x_ref.shape
    x = x_ref[...]
    o_ref[...] = x

    # Vertical (sublane-direction) pass: o[i] = min(x[max(0,i-p) .. min(H-1,i+p)])
    for d in range(1, p + 1):
        o_ref[:, 0:H - d, :] = jnp.minimum(o_ref[:, 0:H - d, :], x[:, d:H, :])
        o_ref[:, d:H, :] = jnp.minimum(o_ref[:, d:H, :], x[:, 0:H - d, :])

    v = o_ref[...]

    # Horizontal (lane-direction) pass on the vertical-pass result.
    for d in range(1, p + 1):
        o_ref[:, :, 0:W - d] = jnp.minimum(o_ref[:, :, 0:W - d], v[:, :, d:W])
        o_ref[:, :, d:W] = jnp.minimum(o_ref[:, :, d:W], v[:, :, 0:W - d])


def _pick_channel_block(C, bytes_per_channel, budget=2 * 1024 * 1024):
    """Largest divisor of C whose (cb, H, W) block stays under `budget` bytes."""
    cb = C
    while cb > 1 and cb * bytes_per_channel > budget:
        cb -= 1
        while C % cb:
            cb -= 1
    return cb


def minimum_filter_2d(image, kernel_size=3):
    """Matches MinimumFilter2D.forward semantics (including dim promotion)."""
    if kernel_size % 2 == 0:
        raise ValueError('Kernel size must be odd')

    if image.ndim == 2:
        image = image[None, None]
    elif image.ndim == 3:
        image = image[:, None]
    assert image.ndim == 4, "expected 2D, 3D or 4D input"

    N, C, H, W = image.shape
    p = kernel_size // 2
    if p >= H or p >= W:
        raise ValueError('kernel_size too large for image '
                         '(reflect padding requires pad < dim)')

    itemsize = jnp.dtype(image.dtype).itemsize
    cb = _pick_channel_block(C, H * W * itemsize)
    block_bytes = cb * H * W * itemsize
    # Double-buffered input + output blocks, plus slack.
    vmem_limit = int(max(32 * 1024 * 1024, 5 * block_bytes))
    # TODO(synk): for very large images (block_bytes >~ 8 MiB with cb=1) add an
    # H-tiled grid axis with a p-row halo (pl.Element index map) so the block
    # pipeline fits v7x's 64 MiB VMEM; whole-image blocks are fine otherwise.

    kernel = functools.partial(_min_filter_kernel, p=p)

    out = pl.pallas_call(
        kernel,
        out_shape=jax.ShapeDtypeStruct((N, C, H, W), image.dtype),
        grid_spec=pltpu.PrefetchScalarGridSpec(
            num_scalar_prefetch=0,
            grid=(N, C // cb),
            in_specs=[
                # Last two block dims equal the full array dims -> (8,128) rule ok.
                pl.BlockSpec((None, cb, H, W), lambda n, c: (n, c, 0, 0)),
            ],
            out_specs=pl.BlockSpec((None, cb, H, W), lambda n, c: (n, c, 0, 0)),
        ),
        compiler_params=pltpu.CompilerParams(
            dimension_semantics=("parallel", "parallel"),
            vmem_limit_bytes=vmem_limit),
    )(image)
    return out


def _reference(image, kernel_size=3):
    """Pure-JAX reference mirroring the PyTorch module (explicit reflect pad)."""
    if image.ndim == 2:
        image = image[None, None]
    elif image.ndim == 3:
        image = image[:, None]
    p = kernel_size // 2
    padded = jnp.pad(image, ((0, 0), (0, 0), (p, p), (p, p)), mode='reflect')
    N, C, H, W = image.shape
    mins = None
    for di in range(kernel_size):
        for dj in range(kernel_size):
            win = padded[:, :, di:di + H, dj:dj + W]
            mins = win if mins is None else jnp.minimum(mins, win)
    return mins


if __name__ == "__main__":
    key = jax.random.PRNGKey(0)
    x = jax.random.normal(key, (2, 4, 16, 16), dtype=jnp.float32)

    out = minimum_filter_2d(x, kernel_size=3)
    out = jax.block_until_ready(out)
    ref = _reference(x, kernel_size=3)
    assert out.shape == (2, 4, 16, 16)
    assert jnp.allclose(out, ref), "mismatch vs reference (k=3)"

    # Extra check with a wider window (p=2) to exercise both separable passes.
    x5 = jax.random.normal(jax.random.PRNGKey(0), (1, 3, 16, 16), dtype=jnp.float32)
    out5 = jax.block_until_ready(minimum_filter_2d(x5, kernel_size=5))
    assert jnp.allclose(out5, _reference(x5, kernel_size=5)), "mismatch vs reference (k=5)"

    print("KERNEL_OK")
</pallas_src>

<mosaic_0001>
module attributes {stable_mosaic.version = 11 : i64} {
  func.func @_min_filter_kernel(%arg0: i32, %arg1: i32, %arg2: memref<1x4x16x16xf32, #tpu.memory_space<vmem>>, %arg3: memref<1x4x16x16xf32, #tpu.memory_space<vmem>>) attributes {dimension_semantics = [#tpu.dimension_semantics<parallel>, #tpu.dimension_semantics<parallel>], iteration_bounds = array<i64: 2, 1>, scalar_prefetch = 0 : i64, scratch_operands = 0 : i64, tpu.core_type = #tpu.core_type<tc>, window_params = [{transform_indices = @transform_0, window_bounds = array<i64: 1, 4, 16, 16>}, {transform_indices = @transform_1, window_bounds = array<i64: 1, 4, 16, 16>}]} {
    %c0 = arith.constant 0 : index
    %c0_0 = arith.constant 0 : index
    %c0_1 = arith.constant 0 : index
    %c0_2 = arith.constant 0 : index
    %0 = vector.load %arg2[%c0, %c0_0, %c0_1, %c0_2] : memref<1x4x16x16xf32, #tpu.memory_space<vmem>>, vector<1x4x16x16xf32>
    %1 = vector.shape_cast %0 : vector<1x4x16x16xf32> to vector<4x16x16xf32>
    %c0_3 = arith.constant 0 : index
    %c0_4 = arith.constant 0 : index
    %c0_5 = arith.constant 0 : index
    %c0_6 = arith.constant 0 : index
    %2 = vector.load %arg3[%c0_3, %c0_4, %c0_5, %c0_6] : memref<1x4x16x16xf32, #tpu.memory_space<vmem>>, vector<1x4x16x16xf32>
    %3 = vector.shape_cast %2 : vector<1x4x16x16xf32> to vector<4x16x16xf32>
    %4 = vector.shape_cast %1 : vector<4x16x16xf32> to vector<1x4x16x16xf32>
    tpu.vector_store %arg3[%c0_3, %c0_4, %c0_5, %c0_6], %4 {strides = array<i32>} : memref<1x4x16x16xf32, #tpu.memory_space<vmem>>, vector<1x4x16x16xf32>,
    %c0_7 = arith.constant 0 : index
    %c0_8 = arith.constant 0 : index
    %c0_9 = arith.constant 0 : index
    %c0_10 = arith.constant 0 : index
    %5 = vector.load %arg3[%c0_7, %c0_8, %c0_9, %c0_10] : memref<1x4x16x16xf32, #tpu.memory_space<vmem>>, vector<1x4x15x16xf32>
    %6 = vector.shape_cast %5 : vector<1x4x15x16xf32> to vector<4x15x16xf32>
    %7 = vector.extract_strided_slice %1 {offsets = [0, 1, 0], sizes = [4, 15, 16], strides = [1, 1, 1]} : vector<4x16x16xf32> to vector<4x15x16xf32>
    %8 = arith.minimumf %6, %7 : vector<4x15x16xf32>
    %c0_11 = arith.constant 0 : index
    %c0_12 = arith.constant 0 : index
    %c0_13 = arith.constant 0 : index
    %c0_14 = arith.constant 0 : index
    %9 = vector.load %arg3[%c0_11, %c0_12, %c0_13, %c0_14] : memref<1x4x16x16xf32, #tpu.memory_space<vmem>>, vector<1x4x15x16xf32>
    %10 = vector.shape_cast %9 : vector<1x4x15x16xf32> to vector<4x15x16xf32>
    %11 = vector.shape_cast %8 : vector<4x15x16xf32> to vector<1x4x15x16xf32>
    tpu.vector_store %arg3[%c0_11, %c0_12, %c0_13, %c0_14], %11 {strides = array<i32>} : memref<1x4x16x16xf32, #tpu.memory_space<vmem>>, vector<1x4x15x16xf32>,
    %c0_15 = arith.constant 0 : index
    %c0_16 = arith.constant 0 : index
    %c1 = arith.constant 1 : index
    %c0_17 = arith.constant 0 : index
    %12 = vector.load %arg3[%c0_15, %c0_16, %c1, %c0_17] : memref<1x4x16x16xf32, #tpu.memory_space<vmem>>, vector<1x4x15x16xf32>
    %13 = vector.shape_cast %12 : vector<1x4x15x16xf32> to vector<4x15x16xf32>
    %14 = vector.extract_strided_slice %1 {offsets = [0, 0, 0], sizes = [4, 15, 16], strides = [1, 1, 1]} : vector<4x16x16xf32> to vector<4x15x16xf32>
    %15 = arith.minimumf %13, %14 : vector<4x15x16xf32>
    %c0_18 = arith.constant 0 : index
    %c0_19 = arith.constant 0 : index
    %c1_20 = arith.constant 1 : index
    %c0_21 = arith.constant 0 : index
    %16 = vector.load %arg3[%c0_18, %c0_19, %c1_20, %c0_21] : memref<1x4x16x16xf32, #tpu.memory_space<vmem>>, vector<1x4x15x16xf32>
    %17 = vector.shape_cast %16 : vector<1x4x15x16xf32> to vector<4x15x16xf32>
    %18 = vector.shape_cast %15 : vector<4x15x16xf32> to vector<1x4x15x16xf32>
    tpu.vector_store %arg3[%c0_18, %c0_19, %c1_20, %c0_21], %18 {strides = array<i32>} : memref<1x4x16x16xf32, #tpu.memory_space<vmem>>, vector<1x4x15x16xf32>,
    %c0_22 = arith.constant 0 : index
    %c0_23 = arith.constant 0 : index
    %c0_24 = arith.constant 0 : index
    %c0_25 = arith.constant 0 : index
    %19 = vector.load %arg3[%c0_22, %c0_23, %c0_24, %c0_25] : memref<1x4x16x16xf32, #tpu.memory_space<vmem>>, vector<1x4x16x16xf32>
    %20 = vector.shape_cast %19 : vector<1x4x16x16xf32> to vector<4x16x16xf32>
    %c0_26 = arith.constant 0 : index
    %c0_27 = arith.constant 0 : index
    %c0_28 = arith.constant 0 : index
    %c0_29 = arith.constant 0 : index
    %21 = vector.load %arg3[%c0_26, %c0_27, %c0_28, %c0_29] : memref<1x4x16x16xf32, #tpu.memory_space<vmem>>, vector<1x4x16x15xf32>
    %22 = vector.shape_cast %21 : vector<1x4x16x15xf32> to vector<4x16x15xf32>
    %23 = vector.extract_strided_slice %20 {offsets = [0, 0, 1], sizes = [4, 16, 15], strides = [1, 1, 1]} : vector<4x16x16xf32> to vector<4x16x15xf32>
    %24 = arith.minimumf %22, %23 : vector<4x16x15xf32>
    %c0_30 = arith.constant 0 : index
    %c0_31 = arith.constant 0 : index
    %c0_32 = arith.constant 0 : index
    %c0_33 = arith.constant 0 : index
    %25 = vector.load %arg3[%c0_30, %c0_31, %c0_32, %c0_33] : memref<1x4x16x16xf32, #tpu.memory_space<vmem>>, vector<1x4x16x15xf32>
    %26 = vector.shape_cast %25 : vector<1x4x16x15xf32> to vector<4x16x15xf32>
    %27 = vector.shape_cast %24 : vector<4x16x15xf32> to vector<1x4x16x15xf32>
    tpu.vector_store %arg3[%c0_30, %c0_31, %c0_32, %c0_33], %27 {strides = array<i32>} : memref<1x4x16x16xf32, #tpu.memory_space<vmem>>, vector<1x4x16x15xf32>,
    %c0_34 = arith.constant 0 : index
    %c0_35 = arith.constant 0 : index
    %c0_36 = arith.constant 0 : index
    %c1_37 = arith.constant 1 : index
    %28 = vector.load %arg3[%c0_34, %c0_35, %c0_36, %c1_37] : memref<1x4x16x16xf32, #tpu.memory_space<vmem>>, vector<1x4x16x15xf32>
    %29 = vector.shape_cast %28 : vector<1x4x16x15xf32> to vector<4x16x15xf32>
    %30 = vector.extract_strided_slice %20 {offsets = [0, 0, 0], sizes = [4, 16, 15], strides = [1, 1, 1]} : vector<4x16x16xf32> to vector<4x16x15xf32>
    %31 = arith.minimumf %29, %30 : vector<4x16x15xf32>
    %c0_38 = arith.constant 0 : index
    %c0_39 = arith.constant 0 : index
    %c0_40 = arith.constant 0 : index
    %c1_41 = arith.constant 1 : index
    %32 = vector.load %arg3[%c0_38, %c0_39, %c0_40, %c1_41] : memref<1x4x16x16xf32, #tpu.memory_space<vmem>>, vector<1x4x16x15xf32>
    %33 = vector.shape_cast %32 : vector<1x4x16x15xf32> to vector<4x16x15xf32>
    %34 = vector.shape_cast %31 : vector<4x16x15xf32> to vector<1x4x16x15xf32>
    tpu.vector_store %arg3[%c0_38, %c0_39, %c0_40, %c1_41], %34 {strides = array<i32>} : memref<1x4x16x16xf32, #tpu.memory_space<vmem>>, vector<1x4x16x15xf32>,
    return
  }
  func.func @transform_0(%arg0: i32, %arg1: i32) -> (i32, i32, i32, i32) {
    %c0_i32 = arith.constant 0 : i32
    %c0_i32_0 = arith.constant 0 : i32
    %c0_i32_1 = arith.constant 0 : i32
    return %arg0, %arg1, %c0_i32, %c0_i32_0 : i32, i32, i32, i32
  }
  func.func @transform_1(%arg0: i32, %arg1: i32) -> (i32, i32, i32, i32) {
    %c0_i32 = arith.constant 0 : i32
    %c0_i32_0 = arith.constant 0 : i32
    %c0_i32_1 = arith.constant 0 : i32
    return %arg0, %arg1, %c0_i32, %c0_i32_0 : i32, i32, i32, i32
  }
}

</mosaic_0001>

<llo_original>
// kernel: tpu_custom_call.1
$region0: #{tpu_custom_call.1}
  #allocation0 [shape = 'u32[]', space=smem, size = 0x4, offset = 0x4, fixed_abs, tag = 'smem constant byte address 0x4 - core index']
  #allocation1 [shape = 'u32[144,128]{1,0:T(1,128)}', space=vmem, size = 0x12000, scoped, tag = 'internal scratch']
  %s0 = inlined_call_operand.hbm [shape: f32[2,4,16,16], index: 0, kind: input, shape index: {}]
  %s1 = inlined_call_operand.hbm [shape: f32[2,4,16,16], index: 1, kind: output, shape index: {}]
  %s2 = sld [smem:[#allocation0]]
  $region41: #{tpu_custom_call.1} parent=0
    _
  %s4 = ssub.s32 1, %s2
  %s5 = scalar_select 0, %s4, %s2
  $region1: #{tpu_custom_call.1} parent=0
    #allocation2 [shape = 'u8[65536]{0}', space=vmem, size = 0x10000, scoped, tag = 'input window, operand 0']
    #allocation3 [shape = 's32[2]{0}', space=sflag, size = 0x8, scoped, tag = 'scoped memory for tpu_custom_call.1']
    #allocation4 [shape = 's32[2]{0}', space=sflag, size = 0x8, scoped, tag = 'scoped memory for tpu_custom_call.1']
    #allocation5 [shape = 'u8[65536]{0}', space=vmem, size = 0x10000, scoped, tag = 'output window, operand 0']
    %6 = vsyncpa [#allocation3], 0
    %s7 = scalar_lea.sflag [#allocation3], 1
    %8 = vsyncpa %s7, 0
    %9 = vsyncpa [#allocation4], 0
    %s10 = scalar_lea.sflag [#allocation4], 1
    %11 = vsyncpa %s10, 0
    loop: start=0, step=1, limit=4
    $region2: #{tpu_custom_call.1} parent=1 // loop_pre_header
      _
    $region3: #{tpu_custom_call.1} parent=1 // loop_header
      %s13 = sphi 0, %s17
      %p14 = scmp.ge.s32.totalorder %s13, 4
      %s20 = sphi 0, %s32
      %s21 = sphi 0, %s28
      %s22 = sphi 0, %s20
      %s23 = sphi 0, %s21
      %s24 = sphi 0, %s22
      %s25 = sphi 0, %s23
      %s37 = sphi 0, %s39
      %s40 = sphi 0, %s37
      %s41 = sphi 0, %s40
      %s57 = sphi 0, %s41
      %s65 = sphi 0, %s67
      %s68 = sphi 0, %s65
      %s69 = sphi 0, %s68
      %s85 = sphi 0, %s69
    $region4: #{tpu_custom_call.1} parent=1 // loop_header_branch
      %16 = sbr.rel (%p14) target = $region8
    $region5: #{tpu_custom_call.1} parent=1 // loop_body
      %s18 = ssub.s32 %s13, 1
      %s19 = ssub.s32 %s13, 2
      %s26 = sadd.s32 1, %s21
      %p27 = scmp.ge.s32.totalorder %s26, 1
      %s28 = scalar_select %p27, 0, %s26
      %s29 = sadd.s32 1, %s20
      %s30 = scalar_select %p27, %s29, %s20
      %p31 = scmp.ge.s32.totalorder %s30, 2
      %s32 = scalar_select %p31, 0, %s30
      %s33 = ssub.s32 %s20, %s32
      %s34 = ssub.s32 %s21, %s28
      %s35 = sor.u32 %s33, %s34
      %p36 = scmp.eq.s32.totalorder %s35, 0
      %s38 = sadd.s32 %s37, 1
      %s39 = scalar_select %p36, %s37, %s38
      %p42 = pneg %p36
      %p43 = scmp.eq.s32.totalorder %s13, 1
      %p44 = por %p42, %p43
      %p45 = scmp.ne.s32.totalorder %s37, %s40
      %p46 = scmp.eq.s32.totalorder %s13, 0
      %p47 = por %p45, %p46
      %p48 = scmp.ne.s32.totalorder %s37, %s40
      %p49 = scmp.eq.s32.totalorder %s18, 1
      %p50 = por %p48, %p49
      %p51 = scmp.ne.s32.totalorder %s40, %s41
      %p52 = scmp.eq.s32.totalorder %s18, 0
      %p53 = por %p51, %p52
      %p54 = scmp.ne.s32.totalorder %s40, %s41
      %p55 = scmp.eq.s32.totalorder %s19, 1
      %p56 = por %p54, %p55
      %p58 = scmp.ne.s32.totalorder %s41, %s57
      %p59 = scmp.eq.s32.totalorder %s19, 0
      %p60 = por %p58, %p59
      %s61 = ssub.s32 %s20, %s32
      %s62 = ssub.s32 %s21, %s28
      %s63 = sor.u32 %s61, %s62
      %p64 = scmp.eq.s32.totalorder %s63, 0
      %s66 = sadd.s32 %s65, 1
      %s67 = scalar_select %p64, %s65, %s66
      %p70 = pneg %p64
      %p71 = scmp.eq.s32.totalorder %s13, 1
      %p72 = por %p70, %p71
      %p73 = scmp.ne.s32.totalorder %s65, %s68
      %p74 = scmp.eq.s32.totalorder %s13, 0
      %p75 = por %p73, %p74
      %p76 = scmp.ne.s32.totalorder %s65, %s68
      %p77 = scmp.eq.s32.totalorder %s18, 1
      %p78 = por %p76, %p77
      %p79 = scmp.ne.s32.totalorder %s68, %s69
      %p80 = scmp.eq.s32.totalorder %s18, 0
      %p81 = por %p79, %p80
      %p82 = scmp.ne.s32.totalorder %s68, %s69
      %p83 = scmp.eq.s32.totalorder %s19, 1
      %p84 = por %p82, %p83
      %p86 = scmp.ne.s32.totalorder %s69, %s85
      %p87 = scmp.eq.s32.totalorder %s19, 0
      %p88 = por %p86, %p87
      %p89 = scmp.le.s32.totalorder 1, %s13
      %p90 = scmp.lt.s32.totalorder %s13, 3
      %p91 = pnand %p89, %p90
      %p92 = pneg %p91
      // Predicated region
      $region9: #{tpu_custom_call.1} parent=5 // pred_check
        _
      $region10: #{tpu_custom_call.1} parent=5 // pred_check_branch
        %94 = sbr.rel (%p91) target = $region12
      $region11: #{tpu_custom_call.1} parent=5 // pred_region
        %s95 = ssub.s32 %s13, 1
      $region12: #{tpu_custom_call.1} parent=5 // pred_fallthru
        _
      %p96 = scmp.lt.s32.totalorder %s13, 2
      // Predicated region
      $region13: #{tpu_custom_call.1} parent=5 // pred_check
        %p97 = pneg %p96
      $region14: #{tpu_custom_call.1} parent=5 // pred_check_branch
        %99 = sbr.rel (%p97) target = $region16
      $region15: #{tpu_custom_call.1} parent=5 // pred_region
        // Predicated region
        $region17: #{tpu_custom_call.1} parent=15 // pred_check
          %p100 = pneg %p47
        $region18: #{tpu_custom_call.1} parent=15 // pred_check_branch
          %102 = sbr.rel (%p100) target = $region20
        $region19: #{tpu_custom_call.1} parent=15 // pred_region
          %s103 = sand.u32 %s37, 1
          %s104 = scalar_lea.sflag [#allocation3], %s103
          %s105 = sand.u32 %s37, 1
          %s106 = smul.addr %s105, 64
          %s107 = scalar_lea.vmem [#allocation2], %s106
          %s108 = smul.u32 4, %s21
          %s110 = ssub.s32 1024, 1024
          %111 = vsyncadd %s104, %s110
          %s112 = smul.addr %s108, 2
          %s113 = smul.addr %s20, 8
          %s114 = sadd.s32 %s112, %s113
          %s115 = smul.addr %s114, 128
          %s116 = scalar_lea.hbm %s0, %s115
          %s117 = sshll.u32 %s107, 4
          %s118 = int_to_ptr.vmem [resolvable:$true] %s117
          %123 = dma.hbm_to_vmem [thread:$0]  %s116, 1024, %s118, %s104, 128, 128, 8
        $region20: #{tpu_custom_call.1} parent=15 // pred_fallthru
          _
      $region16: #{tpu_custom_call.1} parent=5 // pred_fallthru
        _
      %p124 = scmp.le.s32.totalorder 1, %s13
      %p125 = scmp.lt.s32.totalorder %s13, 3
      %p126 = pnand %p124, %p125
      %p127 = pneg %p126
      // Predicated region
      $region21: #{tpu_custom_call.1} parent=5 // pred_check
        _
      $region22: #{tpu_custom_call.1} parent=5 // pred_check_branch
        %129 = sbr.rel (%p126) target = $region24
      $region23: #{tpu_custom_call.1} parent=5 // pred_region
        %s130 = ssub.s32 %s13, 1
        %s131 = sand.u32 %s40, 1
        %s132 = scalar_lea.sflag [#allocation3], %s131
        %s133 = sand.u32 %s40, 1
        %s134 = smul.addr %s133, 64
        %s135 = scalar_lea.vmem [#allocation2], %s134
        // Predicated region
        $region25: #{tpu_custom_call.1} parent=23 // pred_check
          %p136 = pneg %p53
        $region26: #{tpu_custom_call.1} parent=23 // pred_check_branch
          %138 = sbr.rel (%p136) target = $region28
        $region27: #{tpu_custom_call.1} parent=23 // pred_region
          %139 = dma.done %s132, 1024
        $region28: #{tpu_custom_call.1} parent=23 // pred_fallthru
          _
        %s140 = sand.u32 %s40, 1
        %s141 = scalar_lea.sflag [#allocation3], %s140
        %s142 = sand.u32 %s40, 1
        %s143 = smul.addr %s142, 64
        %s144 = scalar_lea.vmem [#allocation2], %s143
        %p145 = pneg %p53
        %p146 = pneg %p50
        %p147 = pneg %p81
        %p148 = pneg %p78
        %s149 = sand.u32 %s68, 1
        %s150 = scalar_lea.sflag [#allocation4], %s149
        %s151 = sand.u32 %s68, 1
        %s152 = smul.addr %s151, 64
        %s153 = scalar_lea.vmem [#allocation5], %s152
        %s154 = smul.u32 4, %s23
        %s155 = smul.u32 4, %s23
        %v156 = vld [vmem:[%s135] sm:$0xff]
        %v157 = vld [vmem:[%s135 + $0x8] sm:$0xff]
        %v158 = vld [vmem:[%s135 + $0x10] sm:$0xff]
        %v159 = vld [vmem:[%s135 + $0x18] sm:$0xff]
        %v160 = vld [vmem:[%s135 + $0x20] sm:$0xff]
        %v161 = vld [vmem:[%s135 + $0x28] sm:$0xff]
        %v162 = vld [vmem:[%s135 + $0x30] sm:$0xff]
        %v163 = vld [vmem:[%s135 + $0x38] sm:$0xff]
        %vm164 = vcmask 130048
        %165 = vst.msk [vmem:[%s153] sm:$0xff] %vm164, %v156
        %166 = vst.msk [vmem:[%s153 + $0x8] sm:$0xff] %vm164, %v157
        %167 = vst.msk [vmem:[%s153 + $0x10] sm:$0xff] %vm164, %v158
        %168 = vst.msk [vmem:[%s153 + $0x18] sm:$0xff] %vm164, %v159
        %169 = vst.msk [vmem:[%s153 + $0x20] sm:$0xff] %vm164, %v160
        %170 = vst.msk [vmem:[%s153 + $0x28] sm:$0xff] %vm164, %v161
        %171 = vst.msk [vmem:[%s153 + $0x30] sm:$0xff] %vm164, %v162
        %172 = vst.msk [vmem:[%s153 + $0x38] sm:$0xff] %vm164, %v163
        %v173 = vld [vmem:[%s153] sm:$0xff]
        %v174 = vld [vmem:[%s153 + $0x8] sm:$0x7f]
        %v175 = vld [vmem:[%s153 + $0x10] sm:$0xff]
        %v176 = vld [vmem:[%s153 + $0x18] sm:$0x7f]
        %v177 = vld [vmem:[%s153 + $0x20] sm:$0xff]
        %v178 = vld [vmem:[%s153 + $0x28] sm:$0x7f]
        %v179 = vld [vmem:[%s153 + $0x30] sm:$0xff]
        %v180 = vld [vmem:[%s153 + $0x38] sm:$0x7f]
        %vm189 = vcmask 1046528
        %v190 = vrot.slane %v156, 1
        %v191 = vrot.slane %v157, 1
        %v192 = vsel %vm189, %v190, %v191
        %v193 = vrot.slane %v158, 1
        %v194 = vrot.slane %v159, 1
        %v195 = vsel %vm189, %v193, %v194
        %v196 = vrot.slane %v160, 1
        %v197 = vrot.slane %v161, 1
        %v198 = vsel %vm189, %v196, %v197
        %v199 = vrot.slane %v162, 1
        %v200 = vrot.slane %v163, 1
        %v201 = vsel %vm189, %v199, %v200
        %v210 = vmin.f32 %v173, %v192
        %v211 = vmin.f32 %v174, %v191
        %v212 = vmin.f32 %v175, %v195
        %v213 = vmin.f32 %v176, %v194
        %v214 = vmin.f32 %v177, %v198
        %v215 = vmin.f32 %v178, %v197
        %v216 = vmin.f32 %v179, %v201
        %v217 = vmin.f32 %v180, %v200
        %218 = vst.msk [vmem:[%s153] sm:$0xff] %vm164, %v210
        %vm219 = vcmask 129024
        %220 = vst.msk [vmem:[%s153 + $0x8] sm:$0x7f] %vm219, %v211
        %221 = vst.msk [vmem:[%s153 + $0x10] sm:$0xff] %vm164, %v212
        %222 = vst.msk [vmem:[%s153 + $0x18] sm:$0x7f] %vm219, %v213
        %223 = vst.msk [vmem:[%s153 + $0x20] sm:$0xff] %vm164, %v214
        %224 = vst.msk [vmem:[%s153 + $0x28] sm:$0x7f] %vm219, %v215
        %225 = vst.msk [vmem:[%s153 + $0x30] sm:$0xff] %vm164, %v216
        %226 = vst.msk [vmem:[%s153 + $0x38] sm:$0x7f] %vm219, %v217
        %v227 = vld [vmem:[%s153 + $0x1] sm:$0xff]
        %v228 = vld [vmem:[%s153 + $0x9] sm:$0x7f]
        %v229 = vld [vmem:[%s153 + $0x11] sm:$0xff]
        %v230 = vld [vmem:[%s153 + $0x19] sm:$0x7f]
        %v231 = vld [vmem:[%s153 + $0x21] sm:$0xff]
        %v232 = vld [vmem:[%s153 + $0x29] sm:$0x7f]
        %v233 = vld [vmem:[%s153 + $0x31] sm:$0xff]
        %v234 = vld [vmem:[%s153 + $0x39] sm:$0x7f]
        %v235 = vmin.f32 %v227, %v156
        %v236 = vmin.f32 %v228, %v157
        %v237 = vmin.f32 %v229, %v158
        %v238 = vmin.f32 %v230, %v159
        %v239 = vmin.f32 %v231, %v160
        %v240 = vmin.f32 %v232, %v161
        %v241 = vmin.f32 %v233, %v162
        %v242 = vmin.f32 %v234, %v163
        %243 = vst.msk [vmem:[%s153 + $0x1] sm:$0xff] %vm164, %v235
        %244 = vst.msk [vmem:[%s153 + $0x9] sm:$0x7f] %vm219, %v236
        %245 = vst.msk [vmem:[%s153 + $0x11] sm:$0xff] %vm164, %v237
        %246 = vst.msk [vmem:[%s153 + $0x19] sm:$0x7f] %vm219, %v238
        %247 = vst.msk [vmem:[%s153 + $0x21] sm:$0xff] %vm164, %v239
        %248 = vst.msk [vmem:[%s153 + $0x29] sm:$0x7f] %vm219, %v240
        %249 = vst.msk [vmem:[%s153 + $0x31] sm:$0xff] %vm164, %v241
        %250 = vst.msk [vmem:[%s153 + $0x39] sm:$0x7f] %vm219, %v242
        %v251 = vld [vmem:[%s153] sm:$0xff]
        %v252 = vld [vmem:[%s153 + $0x8] sm:$0xff]
        %v253 = vld [vmem:[%s153 + $0x10] sm:$0xff]
        %v254 = vld [vmem:[%s153 + $0x18] sm:$0xff]
        %v255 = vld [vmem:[%s153 + $0x20] sm:$0xff]
        %v256 = vld [vmem:[%s153 + $0x28] sm:$0xff]
        %v257 = vld [vmem:[%s153 + $0x30] sm:$0xff]
        %v258 = vld [vmem:[%s153 + $0x38] sm:$0xff]
        %267 = vrot.lane.b32.xlu0 %v251, 127
        %v268 = vpop.permute.xlu0 %267
        %269 = vrot.lane.b32.xlu0 %v252, 127
        %v270 = vpop.permute.xlu0 %269
        %271 = vrot.lane.b32.xlu0 %v253, 127
        %v272 = vpop.permute.xlu0 %271
        %273 = vrot.lane.b32.xlu0 %v254, 127
        %v274 = vpop.permute.xlu0 %273
        %275 = vrot.lane.b32.xlu0 %v255, 127
        %v276 = vpop.permute.xlu0 %275
        %277 = vrot.lane.b32.xlu0 %v256, 127
        %v278 = vpop.permute.xlu0 %277
        %279 = vrot.lane.b32.xlu0 %v257, 127
        %v280 = vpop.permute.xlu0 %279
        %281 = vrot.lane.b32.xlu0 %v258, 127
        %v282 = vpop.permute.xlu0 %281
        %v291 = vmin.f32 %v251, %v268
        %v292 = vmin.f32 %v252, %v270
        %v293 = vmin.f32 %v253, %v272
        %v294 = vmin.f32 %v254, %v274
        %v295 = vmin.f32 %v255, %v276
        %v296 = vmin.f32 %v256, %v278
        %v297 = vmin.f32 %v257, %v280
        %v298 = vmin.f32 %v258, %v282
        %vm299 = vcmask 121856
        %300 = vst.msk [vmem:[%s153] sm:$0xff] %vm299, %v291
        %301 = vst.msk [vmem:[%s153 + $0x8] sm:$0xff] %vm299, %v292
        %302 = vst.msk [vmem:[%s153 + $0x10] sm:$0xff] %vm299, %v293
        %303 = vst.msk [vmem:[%s153 + $0x18] sm:$0xff] %vm299, %v294
        %304 = vst.msk [vmem:[%s153 + $0x20] sm:$0xff] %vm299, %v295
        %305 = vst.msk [vmem:[%s153 + $0x28] sm:$0xff] %vm299, %v296
        %306 = vst.msk [vmem:[%s153 + $0x30] sm:$0xff] %vm299, %v297
        %307 = vst.msk [vmem:[%s153 + $0x38] sm:$0xff] %vm299, %v298
        %v308 = vld [vmem:[%s153] sm:$0xff]
        %v309 = vld [vmem:[%s153 + $0x8] sm:$0xff]
        %v310 = vld [vmem:[%s153 + $0x10] sm:$0xff]
        %v311 = vld [vmem:[%s153 + $0x18] sm:$0xff]
        %v312 = vld [vmem:[%s153 + $0x20] sm:$0xff]
        %v313 = vld [vmem:[%s153 + $0x28] sm:$0xff]
        %v314 = vld [vmem:[%s153 + $0x30] sm:$0xff]
        %v315 = vld [vmem:[%s153 + $0x38] sm:$0xff]
        %316 = vrot.lane.b32.xlu0 %v251, 1
        %v317 = vpop.permute.xlu0 %316
        %318 = vrot.lane.b32.xlu0 %v252, 1
        %v319 = vpop.permute.xlu0 %318
        %320 = vrot.lane.b32.xlu0 %v253, 1
        %v321 = vpop.permute.xlu0 %320
        %322 = vrot.lane.b32.xlu0 %v254, 1
        %v323 = vpop.permute.xlu0 %322
        %324 = vrot.lane.b32.xlu0 %v255, 1
        %v325 = vpop.permute.xlu0 %324
        %326 = vrot.lane.b32.xlu0 %v256, 1
        %v327 = vpop.permute.xlu0 %326
        %328 = vrot.lane.b32.xlu0 %v257, 1
        %v329 = vpop.permute.xlu0 %328
        %330 = vrot.lane.b32.xlu0 %v258, 1
        %v331 = vpop.permute.xlu0 %330
        %v340 = vmin.f32 %v308, %v317
        %v341 = vmin.f32 %v309, %v319
        %v342 = vmin.f32 %v310, %v321
        %v343 = vmin.f32 %v311, %v323
        %v344 = vmin.f32 %v312, %v325
        %v345 = vmin.f32 %v313, %v327
        %v346 = vmin.f32 %v314, %v329
        %v347 = vmin.f32 %v315, %v331
        %vm348 = vcmask 130056
        %349 = vst.msk [vmem:[%s153] sm:$0xff] %vm348, %v340
        %350 = vst.msk [vmem:[%s153 + $0x8] sm:$0xff] %vm348, %v341
        %351 = vst.msk [vmem:[%s153 + $0x10] sm:$0xff] %vm348, %v342
        %352 = vst.msk [vmem:[%s153 + $0x18] sm:$0xff] %vm348, %v343
        %353 = vst.msk [vmem:[%s153 + $0x20] sm:$0xff] %vm348, %v344
        %354 = vst.msk [vmem:[%s153 + $0x28] sm:$0xff] %vm348, %v345
        %355 = vst.msk [vmem:[%s153 + $0x30] sm:$0xff] %vm348, %v346
        %356 = vst.msk [vmem:[%s153 + $0x38] sm:$0xff] %vm348, %v347
        %s357 = sand.u32 %s68, 1
        %s358 = scalar_lea.sflag [#allocation4], %s357
        %s359 = sand.u32 %s68, 1
        %s360 = smul.addr %s359, 64
        %s361 = scalar_lea.vmem [#allocation5], %s360
        // Predicated region
        $region29: #{tpu_custom_call.1} parent=23 // pred_check
          %p362 = pneg %p78
        $region30: #{tpu_custom_call.1} parent=23 // pred_check_branch
          %364 = sbr.rel (%p362) target = $region32
        $region31: #{tpu_custom_call.1} parent=23 // pred_region
          %s365 = smul.u32 4, %s23
          %s367 = ssub.s32 1024, 1024
          %368 = vsyncadd %s358, %s367
          %s369 = smul.addr %s365, 2
          %s370 = smul.addr %s22, 8
          %s371 = sadd.s32 %s369, %s370
          %s372 = smul.addr %s371, 128
          %s373 = scalar_lea.hbm %s1, %s372
          %s374 = sshll.u32 %s361, 4
          %s375 = int_to_ptr.vmem [resolvable:$true] %s374
          %380 = dma.vmem_to_hbm [thread:$0]  %s375, 1024, %s373, %s358, 128, 128, 8
        $region32: #{tpu_custom_call.1} parent=23 // pred_fallthru
          _
      $region24: #{tpu_custom_call.1} parent=5 // pred_fallthru
        _
      %p381 = scmp.le.s32.totalorder 2, %s13
      // Predicated region
      $region33: #{tpu_custom_call.1} parent=5 // pred_check
        %p382 = pneg %p381
      $region34: #{tpu_custom_call.1} parent=5 // pred_check_branch
        %384 = sbr.rel (%p382) target = $region36
      $region35: #{tpu_custom_call.1} parent=5 // pred_region
        %s385 = ssub.s32 %s13, 2
        // Predicated region
        $region37: #{tpu_custom_call.1} parent=35 // pred_check
          %p386 = pneg %p84
        $region38: #{tpu_custom_call.1} parent=35 // pred_check_branch
          %388 = sbr.rel (%p386) target = $region40
        $region39: #{tpu_custom_call.1} parent=35 // pred_region
          %s389 = sand.u32 %s69, 1
          %s390 = scalar_lea.sflag [#allocation4], %s389
          %s391 = sand.u32 %s69, 1
          %s392 = smul.addr %s391, 64
          %s393 = scalar_lea.vmem [#allocation5], %s392
          %394 = dma.done %s390, 1024
        $region40: #{tpu_custom_call.1} parent=35 // pred_fallthru
          _
      $region36: #{tpu_custom_call.1} parent=5 // pred_fallthru
        _
    $region6: #{tpu_custom_call.1} parent=1 // loop_footer
      %s17 = sadd.s32 1, %s13
    $region7: #{tpu_custom_call.1} parent=1 // loop_footer_branch
      %12 = sbr.rel target = $region3
    $region8: #{tpu_custom_call.1} parent=1 // loop_exit
      _
    %395 = vsyncpa [#allocation3], 1
    %s396 = scalar_lea.sflag [#allocation3], 1
    %397 = vsyncpa %s396, 1
    %398 = vsyncpa [#allocation4], 1
    %s399 = scalar_lea.sflag [#allocation4], 1
    %400 = vsyncpa %s399, 1

</llo_original>
